<compile_context>
chip_gen: v6e
topology: v6e:2x2x1
jax: 0.10.0
libtpu: 0.0.40
codegen_flags: <defaults>
</compile_context>

<pallas_src>
import jax
import jax.numpy as jnp
from jax.experimental import pallas as pl
from jax.experimental.pallas import tpu as pltpu

IN_DIM, H1, H2, OUT_DIM = 64, 128, 256, 784


def generator_kernel(x_ref, w1_ref, b1_ref, w2_ref, b2_ref, w3_ref, b3_ref,
                     out_ref):
    # Matmul operands in bf16 (native MXU format); accumulate + elementwise
    # (bias add / ReLU / tanh) in f32 (portable to v5e's f32-only VPU/EUP).
    x = x_ref[...].astype(jnp.bfloat16)

    h1 = jnp.dot(x, w1_ref[...], preferred_element_type=jnp.float32)
    h1 = jnp.maximum(h1 + b1_ref[...], 0.0)

    h2 = jnp.dot(h1.astype(jnp.bfloat16), w2_ref[...],
                 preferred_element_type=jnp.float32)
    h2 = jnp.maximum(h2 + b2_ref[...], 0.0)

    h3 = jnp.dot(h2.astype(jnp.bfloat16), w3_ref[...],
                 preferred_element_type=jnp.float32)
    h3 = jnp.maximum(h3 + b3_ref[...], 0.0)

    out_ref[...] = jnp.tanh(h3)


def prepare_params(params):
    """One-time parameter prep: cast weights to bf16 (MXU operand format).

    Call once and reuse; keeps the cast off the per-call critical path.
    """
    w1, b1, w2, b2, w3, b3 = params
    return (w1.astype(jnp.bfloat16), b1,
            w2.astype(jnp.bfloat16), b2,
            w3.astype(jnp.bfloat16), b3)


def generator_forward(x, prepared_params, *, tb=512):
    """x: (B, 64) float32 -> (B, 784) float32."""
    w1, b1, w2, b2, w3, b3 = prepared_params
    B = x.shape[0]

    # Grid-step count: enough steps to cap the tile at `tb`, and at least 2
    # steps for B >= 16 so v7x's second TensorCore gets work.
    n_steps = pl.cdiv(B, tb)
    if B >= 16:
        n_steps = max(n_steps, 2)
    # Tile chosen to minimize batch padding (multiple of 8 sublanes).
    TB = pl.cdiv(pl.cdiv(B, n_steps), 8) * 8
    B_pad = n_steps * TB
    if B_pad != B:
        x = jnp.pad(x, ((0, B_pad - B), (0, 0)))

    const = lambda i: (0, 0)  # weights/biases resident across grid steps

    out = pl.pallas_call(
        generator_kernel,
        out_shape=jax.ShapeDtypeStruct((B_pad, OUT_DIM), jnp.float32),
        grid=(n_steps,),
        in_specs=[
            pl.BlockSpec((TB, IN_DIM), lambda i: (i, 0)),   # x (streamed)
            pl.BlockSpec((IN_DIM, H1), const),              # w1
            pl.BlockSpec((1, H1), const),                   # b1
            pl.BlockSpec((H1, H2), const),                  # w2
            pl.BlockSpec((1, H2), const),                   # b2
            pl.BlockSpec((H2, OUT_DIM), const),             # w3
            pl.BlockSpec((1, OUT_DIM), const),              # b3
        ],
        out_specs=pl.BlockSpec((TB, OUT_DIM), lambda i: (i, 0)),
        compiler_params=pltpu.CompilerParams(
            dimension_semantics=("parallel",),   # megacore sharding on v7x
            vmem_limit_bytes=48 * 1024 * 1024,   # headroom for TB>=512 on v5e
        ),
    )(x, w1, b1, w2, b2, w3, b3)

    # Only ragged batches need a (small) row slice; columns are exact.
    return out if B_pad == B else out[:B]


def init_params(key):
    """PyTorch nn.Linear default init: U[-1/sqrt(fan_in), 1/sqrt(fan_in)]."""
    keys = jax.random.split(key, 6)

    def linear(kw, kb, fan_in, fan_out):
        bound = 1.0 / jnp.sqrt(jnp.float32(fan_in))
        w = jax.random.uniform(kw, (fan_in, fan_out), jnp.float32, -bound, bound)
        b = jax.random.uniform(kb, (1, fan_out), jnp.float32, -bound, bound)
        return w, b

    w1, b1 = linear(keys[0], keys[1], IN_DIM, H1)
    w2, b2 = linear(keys[2], keys[3], H1, H2)
    w3, b3 = linear(keys[4], keys[5], H2, OUT_DIM)
    return (w1, b1, w2, b2, w3, b3)


def reference_forward(x, params):
    """Pure-JAX reference using the same bf16-matmul / f32-elementwise recipe.

    Note: vs a true f32 PyTorch forward, the bf16 MXU operands introduce
    ~1e-2-level error; this is the documented accuracy tradeoff.
    """
    w1, b1, w2, b2, w3, b3 = params
    bf = jnp.bfloat16
    h = jnp.maximum(
        jnp.dot(x.astype(bf), w1.astype(bf), preferred_element_type=jnp.float32)
        + b1, 0.0)
    h = jnp.maximum(
        jnp.dot(h.astype(bf), w2.astype(bf), preferred_element_type=jnp.float32)
        + b2, 0.0)
    h = jnp.maximum(
        jnp.dot(h.astype(bf), w3.astype(bf), preferred_element_type=jnp.float32)
        + b3, 0.0)
    return jnp.tanh(h)


if __name__ == "__main__":
    key = jax.random.PRNGKey(0)
    k_params, k_x = jax.random.split(key)
    params = init_params(k_params)
    prepared = prepare_params(params)   # one-time bf16 weight prep

    # Small demo batch plus a ragged batch that exercises the multi-step grid
    # (B=300 -> 2 steps of TB=152, only 4 padded rows).
    for B in (8, 300):
        x = jax.random.normal(jax.random.fold_in(k_x, B), (B, IN_DIM),
                              jnp.float32)
        out = jax.block_until_ready(generator_forward(x, prepared))
        ref = reference_forward(x, params)
        assert out.shape == (B, OUT_DIM), out.shape
        assert jnp.allclose(out, ref, atol=1e-2, rtol=1e-2), (
            f"mismatch vs reference at B={B}")

    print("KERNEL_OK")
</pallas_src>

<mosaic_0001>
module attributes {stable_mosaic.version = 11 : i64} {
  func.func @generator_kernel(%arg0: i32, %arg1: memref<8x64xf32, #tpu.memory_space<vmem>>, %arg2: memref<64x128xbf16, #tpu.memory_space<vmem>>, %arg3: memref<1x128xf32, #tpu.memory_space<vmem>>, %arg4: memref<128x256xbf16, #tpu.memory_space<vmem>>, %arg5: memref<1x256xf32, #tpu.memory_space<vmem>>, %arg6: memref<256x784xbf16, #tpu.memory_space<vmem>>, %arg7: memref<1x784xf32, #tpu.memory_space<vmem>>, %arg8: memref<8x784xf32, #tpu.memory_space<vmem>>) attributes {dimension_semantics = [#tpu.dimension_semantics<parallel>], iteration_bounds = array<i64: 1>, scalar_prefetch = 0 : i64, scratch_operands = 0 : i64, tpu.core_type = #tpu.core_type<tc>, window_params = [{transform_indices = @transform_0, window_bounds = array<i64: 8, 64>}, {pipeline_mode = #tpu.pipeline_mode<synchronous>, transform_indices = @transform_1, window_bounds = array<i64: 64, 128>}, {pipeline_mode = #tpu.pipeline_mode<synchronous>, transform_indices = @transform_2, window_bounds = array<i64: 1, 128>}, {pipeline_mode = #tpu.pipeline_mode<synchronous>, transform_indices = @transform_3, window_bounds = array<i64: 128, 256>}, {pipeline_mode = #tpu.pipeline_mode<synchronous>, transform_indices = @transform_4, window_bounds = array<i64: 1, 256>}, {pipeline_mode = #tpu.pipeline_mode<synchronous>, transform_indices = @transform_5, window_bounds = array<i64: 256, 784>}, {pipeline_mode = #tpu.pipeline_mode<synchronous>, transform_indices = @transform_6, window_bounds = array<i64: 1, 784>}, {transform_indices = @transform_7, window_bounds = array<i64: 8, 784>}]} {
    %c0 = arith.constant 0 : index
    %c0_0 = arith.constant 0 : index
    %0 = vector.load %arg1[%c0, %c0_0] : memref<8x64xf32, #tpu.memory_space<vmem>>, vector<8x64xf32>
    %1 = arith.truncf %0 : vector<8x64xf32> to vector<8x64xbf16>
    %c0_1 = arith.constant 0 : index
    %c0_2 = arith.constant 0 : index
    %2 = vector.load %arg2[%c0_1, %c0_2] : memref<64x128xbf16, #tpu.memory_space<vmem>>, vector<64x128xbf16>
    %cst = arith.constant dense<0.000000e+00> : vector<8x128xf32>
    %3 = tpu.matmul %1, %2, %cst {dimension_numbers = #tpu.dot_dimension_numbers<[1], [0], [0], [1], [0, 0, 1, 1], [], []>} : vector<8x64xbf16>, vector<64x128xbf16>, vector<8x128xf32> -> vector<8x128xf32>
    %c0_3 = arith.constant 0 : index
    %c0_4 = arith.constant 0 : index
    %4 = vector.load %arg3[%c0_3, %c0_4] : memref<1x128xf32, #tpu.memory_space<vmem>>, vector<1x128xf32>
    %5 = vector.broadcast %4 : vector<1x128xf32> to vector<8x128xf32>
    %6 = arith.addf %3, %5 : vector<8x128xf32>
    %cst_5 = arith.constant 0.000000e+00 : f32
    %7 = vector.broadcast %cst_5 : f32 to vector<8x128xf32>
    %8 = arith.maximumf %6, %7 : vector<8x128xf32>
    %9 = arith.truncf %8 : vector<8x128xf32> to vector<8x128xbf16>
    %c0_6 = arith.constant 0 : index
    %c0_7 = arith.constant 0 : index
    %10 = vector.load %arg4[%c0_6, %c0_7] : memref<128x256xbf16, #tpu.memory_space<vmem>>, vector<128x256xbf16>
    %cst_8 = arith.constant dense<0.000000e+00> : vector<8x256xf32>
    %11 = tpu.matmul %9, %10, %cst_8 {dimension_numbers = #tpu.dot_dimension_numbers<[1], [0], [0], [1], [0, 0, 1, 1], [], []>} : vector<8x128xbf16>, vector<128x256xbf16>, vector<8x256xf32> -> vector<8x256xf32>
    %c0_9 = arith.constant 0 : index
    %c0_10 = arith.constant 0 : index
    %12 = vector.load %arg5[%c0_9, %c0_10] : memref<1x256xf32, #tpu.memory_space<vmem>>, vector<1x256xf32>
    %13 = vector.broadcast %12 : vector<1x256xf32> to vector<8x256xf32>
    %14 = arith.addf %11, %13 : vector<8x256xf32>
    %cst_11 = arith.constant 0.000000e+00 : f32
    %15 = vector.broadcast %cst_11 : f32 to vector<8x256xf32>
    %16 = arith.maximumf %14, %15 : vector<8x256xf32>
    %17 = arith.truncf %16 : vector<8x256xf32> to vector<8x256xbf16>
    %c0_12 = arith.constant 0 : index
    %c0_13 = arith.constant 0 : index
    %18 = vector.load %arg6[%c0_12, %c0_13] : memref<256x784xbf16, #tpu.memory_space<vmem>>, vector<256x784xbf16>
    %cst_14 = arith.constant dense<0.000000e+00> : vector<8x784xf32>
    %19 = tpu.matmul %17, %18, %cst_14 {dimension_numbers = #tpu.dot_dimension_numbers<[1], [0], [0], [1], [0, 0, 1, 1], [], []>} : vector<8x256xbf16>, vector<256x784xbf16>, vector<8x784xf32> -> vector<8x784xf32>
    %c0_15 = arith.constant 0 : index
    %c0_16 = arith.constant 0 : index
    %20 = vector.load %arg7[%c0_15, %c0_16] : memref<1x784xf32, #tpu.memory_space<vmem>>, vector<1x784xf32>
    %21 = vector.broadcast %20 : vector<1x784xf32> to vector<8x784xf32>
    %22 = arith.addf %19, %21 : vector<8x784xf32>
    %cst_17 = arith.constant 0.000000e+00 : f32
    %23 = vector.broadcast %cst_17 : f32 to vector<8x784xf32>
    %24 = arith.maximumf %22, %23 : vector<8x784xf32>
    %25 = math.tanh %24 : vector<8x784xf32>
    %c0_18 = arith.constant 0 : index
    %c0_19 = arith.constant 0 : index
    %26 = vector.load %arg8[%c0_18, %c0_19] : memref<8x784xf32, #tpu.memory_space<vmem>>, vector<8x784xf32>
    tpu.vector_store %arg8[%c0_18, %c0_19], %25 {strides = array<i32>} : memref<8x784xf32, #tpu.memory_space<vmem>>, vector<8x784xf32>,
    return
  }
  func.func @transform_0(%arg0: i32) -> (i32, i32) {
    %c0_i32 = arith.constant 0 : i32
    %c0_i32_0 = arith.constant 0 : i32
    return %arg0, %c0_i32 : i32, i32
  }
  func.func @transform_1(%arg0: i32) -> (i32, i32) {
    %c0_i32 = arith.constant 0 : i32
    %c0_i32_0 = arith.constant 0 : i32
    %c0_i32_1 = arith.constant 0 : i32
    return %c0_i32, %c0_i32_0 : i32, i32
  }
  func.func @transform_2(%arg0: i32) -> (i32, i32) {
    %c0_i32 = arith.constant 0 : i32
    %c0_i32_0 = arith.constant 0 : i32
    %c0_i32_1 = arith.constant 0 : i32
    return %c0_i32, %c0_i32_0 : i32, i32
  }
  func.func @transform_3(%arg0: i32) -> (i32, i32) {
    %c0_i32 = arith.constant 0 : i32
    %c0_i32_0 = arith.constant 0 : i32
    %c0_i32_1 = arith.constant 0 : i32
    return %c0_i32, %c0_i32_0 : i32, i32
  }
  func.func @transform_4(%arg0: i32) -> (i32, i32) {
    %c0_i32 = arith.constant 0 : i32
    %c0_i32_0 = arith.constant 0 : i32
    %c0_i32_1 = arith.constant 0 : i32
    return %c0_i32, %c0_i32_0 : i32, i32
  }
  func.func @transform_5(%arg0: i32) -> (i32, i32) {
    %c0_i32 = arith.constant 0 : i32
    %c0_i32_0 = arith.constant 0 : i32
    %c0_i32_1 = arith.constant 0 : i32
    return %c0_i32, %c0_i32_0 : i32, i32
  }
  func.func @transform_6(%arg0: i32) -> (i32, i32) {
    %c0_i32 = arith.constant 0 : i32
    %c0_i32_0 = arith.constant 0 : i32
    %c0_i32_1 = arith.constant 0 : i32
    return %c0_i32, %c0_i32_0 : i32, i32
  }
  func.func @transform_7(%arg0: i32) -> (i32, i32) {
    %c0_i32 = arith.constant 0 : i32
    %c0_i32_0 = arith.constant 0 : i32
    return %arg0, %c0_i32 : i32, i32
  }
}

</mosaic_0001>

<llo_original>
// kernel: tpu_custom_call.1
$region0: #{tpu_custom_call.1}
  #allocation0 [shape = 'u32[]', space=smem, size = 0x4, offset = 0x4, fixed_abs, tag = 'smem constant byte address 0x4 - core index']
  #allocation1 [shape = 'u32[144,128]{1,0:T(1,128)}', space=vmem, size = 0x12000, scoped, tag = 'internal scratch']
  %s0 = inlined_call_operand.vmem [shape: f32[8,64], index: 0, kind: input, shape index: {}]
  %s1 = inlined_call_operand.vmem [shape: bf16[64,128], index: 1, kind: input, shape index: {}]
  %s2 = inlined_call_operand.vmem [shape: f32[1,128], index: 2, kind: input, shape index: {}]
  %s3 = inlined_call_operand.vmem [shape: bf16[128,256], index: 3, kind: input, shape index: {}]
  %s4 = inlined_call_operand.vmem [shape: f32[1,256], index: 4, kind: input, shape index: {}]
  %s5 = inlined_call_operand.vmem [shape: bf16[256,784], index: 5, kind: input, shape index: {}]
  %s6 = inlined_call_operand.vmem [shape: f32[1,784], index: 6, kind: input, shape index: {}]
  %s7 = inlined_call_operand.hbm [shape: f32[8,784], index: 7, kind: output, shape index: {}]
  %s8 = sld [smem:[#allocation0]]
  $region38: #{tpu_custom_call.1} parent=0
    _
  %s10 = ssub.s32 1, %s8
  %s11 = scalar_select 0, %s10, %s8
  $region1: #{tpu_custom_call.1} parent=0
    #allocation2 [shape = 'u8[28672]{0}', space=vmem, size = 0x7000, scoped, tag = 'output window, operand 0, single buffered']
    #allocation3 [shape = 's32[1]{0}', space=sflag, size = 0x4, scoped, tag = 'scoped memory for tpu_custom_call.1']
    %12 = vsyncpa [#allocation3], 0
    // Predicated region
    $region2: #{tpu_custom_call.1} parent=1 // pred_check
      _
    $region3: #{tpu_custom_call.1} parent=1 // pred_check_branch
      %14 = sbr.rel (0) target = $region5
    $region4: #{tpu_custom_call.1} parent=1 // pred_region
      _
    $region5: #{tpu_custom_call.1} parent=1 // pred_fallthru
      _
    // Predicated region
    $region6: #{tpu_custom_call.1} parent=1 // pred_check
      _
    $region7: #{tpu_custom_call.1} parent=1 // pred_check_branch
      %16 = sbr.rel (0) target = $region9
    $region8: #{tpu_custom_call.1} parent=1 // pred_region
      _
    $region9: #{tpu_custom_call.1} parent=1 // pred_fallthru
      _
    // Predicated region
    $region10: #{tpu_custom_call.1} parent=1 // pred_check
      _
    $region11: #{tpu_custom_call.1} parent=1 // pred_check_branch
      %18 = sbr.rel (0) target = $region13
    $region12: #{tpu_custom_call.1} parent=1 // pred_region
      _
    $region13: #{tpu_custom_call.1} parent=1 // pred_fallthru
      _
    // Predicated region
    $region14: #{tpu_custom_call.1} parent=1 // pred_check
      _
    $region15: #{tpu_custom_call.1} parent=1 // pred_check_branch
      %20 = sbr.rel (0) target = $region17
    $region16: #{tpu_custom_call.1} parent=1 // pred_region
      _
    $region17: #{tpu_custom_call.1} parent=1 // pred_fallthru
      _
    // Predicated region
    $region18: #{tpu_custom_call.1} parent=1 // pred_check
      _
    $region19: #{tpu_custom_call.1} parent=1 // pred_check_branch
      %22 = sbr.rel (0) target = $region21
    $region20: #{tpu_custom_call.1} parent=1 // pred_region
      _
    $region21: #{tpu_custom_call.1} parent=1 // pred_fallthru
      _
    // Predicated region
    $region22: #{tpu_custom_call.1} parent=1 // pred_check
      _
    $region23: #{tpu_custom_call.1} parent=1 // pred_check_branch
      %24 = sbr.rel (0) target = $region25
    $region24: #{tpu_custom_call.1} parent=1 // pred_region
      _
    $region25: #{tpu_custom_call.1} parent=1 // pred_fallthru
      _
    // Predicated region
    $region26: #{tpu_custom_call.1} parent=1 // pred_check
      _
    $region27: #{tpu_custom_call.1} parent=1 // pred_check_branch
      %26 = sbr.rel (0) target = $region29
    $region28: #{tpu_custom_call.1} parent=1 // pred_region
      _
    $region29: #{tpu_custom_call.1} parent=1 // pred_fallthru
      _
    %v28 = vld [vmem:[%s0] sm:$0xff]
    %v29 = vpack.c.bf16 %v28, %v28
    %v30 = vld [vmem:[%s1] sm:$0xf]
    %v31 = vld [vmem:[%s1 + $0x4] sm:$0xf]
    %v32 = vld [vmem:[%s1 + $0x8] sm:$0xf]
    %v33 = vld [vmem:[%s1 + $0xc] sm:$0xf]
    %v34 = vld [vmem:[%s1 + $0x10] sm:$0xf]
    %v35 = vld [vmem:[%s1 + $0x14] sm:$0xf]
    %v36 = vld [vmem:[%s1 + $0x18] sm:$0xf]
    %v37 = vld [vmem:[%s1 + $0x1c] sm:$0xf]
    %v38 = vld [vmem:[%s2] sm:$0x1]
    %v40 = vlaneseq
    %v41 = vshrl.u32 %v40, 7
    %v42 = vsub.s32 0, %v41
    %v43 = vrot.slane %v38, %v42
    %v53 = vunpack.c.l.b16 %v30
    %v54 = vunpack.c.l.b16 %v31
    %v55 = vunpack.c.l.b16 %v32
    %v56 = vunpack.c.l.b16 %v33
    %v57 = vunpack.c.l.b16 %v34
    %v58 = vunpack.c.l.b16 %v35
    %v59 = vunpack.c.l.b16 %v36
    %v60 = vunpack.c.l.b16 %v37
    %v61 = vpack.c.b16 %v54, %v53
    %v62 = vpack.c.b16 %v56, %v55
    %v63 = vpack.c.b16 %v58, %v57
    %v64 = vpack.c.b16 %v60, %v59
    %vm69 = vcmask 523264
    %v71 = vsel %vm69, %v29, 0
    %73 = vmatprep.subr.bf16.mxu0 0
    %74 = vmatpush1.bf16.msra.mxu0 0
    %75 = vmatprep.subr.bf16.mxu0 0
    %76 = vmatpush1.bf16.msra.mxu0 0
    %77 = vmatprep.subr.bf16.mxu0 0
    %78 = vmatpush1.bf16.msra.mxu0 0
    %79 = vmatprep.subr.bf16.mxu0 0
    %80 = vmatpush1.bf16.msra.mxu0 0
    %81 = vmatprep.subr.bf16.mxu0 0
    %82 = vmatpush1.bf16.msra.mxu0 %v64
    %83 = vmatprep.subr.bf16.mxu0 0
    %84 = vmatpush1.bf16.msra.mxu0 %v63
    %85 = vmatprep.subr.bf16.mxu0 0
    %86 = vmatpush1.bf16.msra.mxu0 %v62
    %87 = vmatprep.subr.bf16.mxu0 0
    %88 = vmatpush1.bf16.msra.mxu0 %v61
    %89 = vmatprep.subr.bf16.mxu0 0
    %90 = vmatpush2.bf16.msra.mxu0 0
    %91 = vmatprep.subr.bf16.mxu0 0
    %92 = vmatpush2.bf16.msra.mxu0 0
    %93 = vmatprep.subr.bf16.mxu0 0
    %94 = vmatpush2.bf16.msra.mxu0 0
    %95 = vmatprep.subr.bf16.mxu0 0
    %96 = vmatpush2.bf16.msra.mxu0 0
    %97 = vmatprep.subr.bf16.mxu0 0
    %98 = vmatpush2.bf16.msra.mxu0 0
    %99 = vmatprep.subr.bf16.mxu0 0
    %100 = vmatpush2.bf16.msra.mxu0 0
    %101 = vmatprep.subr.bf16.mxu0 0
    %102 = vmatpush2.bf16.msra.mxu0 0
    %103 = vmatprep.subr.bf16.mxu0 0
    %104 = vmatpush2.bf16.msra.mxu0 0
    %105 = vmatprep.mubr.bf16.mxu0 0
    %106 = vmatmul.mubr.bf16.gmra.mxu0 %v71
    %v107 = vpop.f32.mrf.mxu0
    %v108 = vadd.f32 %v43, %v107
    %v109 = vpop.f32.mrf.mxu0
    %v110 = vpop.f32.mrf.mxu0
    %v111 = vpop.f32.mrf.mxu0
    %112 = vdwg.mxu0
    %v113 = vmax.f32 %v108, 0.0
    %v114 = vpack.c.bf16 %v113, %v113
    %v115 = vld [vmem:[%s3] sm:$0xff]
    %v116 = vld [vmem:[%s3 + $0x8] sm:$0xff]
    %v117 = vld [vmem:[%s3 + $0x10] sm:$0xff]
    %v118 = vld [vmem:[%s3 + $0x18] sm:$0xff]
    %v119 = vld [vmem:[%s3 + $0x20] sm:$0xff]
    %v120 = vld [vmem:[%s3 + $0x28] sm:$0xff]
    %v121 = vld [vmem:[%s3 + $0x30] sm:$0xff]
    %v122 = vld [vmem:[%s3 + $0x38] sm:$0xff]
    %v123 = vld [vmem:[%s3 + $0x40] sm:$0xff]
    %v124 = vld [vmem:[%s3 + $0x48] sm:$0xff]
    %v125 = vld [vmem:[%s3 + $0x50] sm:$0xff]
    %v126 = vld [vmem:[%s3 + $0x58] sm:$0xff]
    %v127 = vld [vmem:[%s3 + $0x60] sm:$0xff]
    %v128 = vld [vmem:[%s3 + $0x68] sm:$0xff]
    %v129 = vld [vmem:[%s3 + $0x70] sm:$0xff]
    %v130 = vld [vmem:[%s3 + $0x78] sm:$0xff]
    %v131 = vld [vmem:[%s4] sm:$0x3]
    %v133 = vlaneseq
    %v134 = vshrl.u32 %v133, 7
    %v135 = vsub.s32 0, %v134
    %v136 = vrot.slane %v131, %v135
    %v137 = vlaneseq
    %v138 = vshrl.u32 %v137, 7
    %v139 = vsub.s32 1, %v138
    %v140 = vrot.slane %v131, %v139
    %v159 = vunpack.c.l.b16 %v115
    %v160 = vunpack.c.h.b16 %v115
    %v161 = vunpack.c.l.b16 %v116
    %v162 = vunpack.c.h.b16 %v116
    %v163 = vunpack.c.l.b16 %v117
    %v164 = vunpack.c.h.b16 %v117
    %v165 = vunpack.c.l.b16 %v118
    %v166 = vunpack.c.h.b16 %v118
    %v167 = vunpack.c.l.b16 %v119
    %v168 = vunpack.c.h.b16 %v119
    %v169 = vunpack.c.l.b16 %v120
    %v170 = vunpack.c.h.b16 %v120
    %v171 = vunpack.c.l.b16 %v121
    %v172 = vunpack.c.h.b16 %v121
    %v173 = vunpack.c.l.b16 %v122
    %v174 = vunpack.c.h.b16 %v122
    %v175 = vunpack.c.l.b16 %v123
    %v176 = vunpack.c.h.b16 %v123
    %v177 = vunpack.c.l.b16 %v124
    %v178 = vunpack.c.h.b16 %v124
    %v179 = vunpack.c.l.b16 %v125
    %v180 = vunpack.c.h.b16 %v125
    %v181 = vunpack.c.l.b16 %v126
    %v182 = vunpack.c.h.b16 %v126
    %v183 = vunpack.c.l.b16 %v127
    %v184 = vunpack.c.h.b16 %v127
    %v185 = vunpack.c.l.b16 %v128
    %v186 = vunpack.c.h.b16 %v128
    %v187 = vunpack.c.l.b16 %v129
    %v188 = vunpack.c.h.b16 %v129
    %v189 = vunpack.c.l.b16 %v130
    %v190 = vunpack.c.h.b16 %v130
    %v191 = vpack.c.b16 %v161, %v159
    %v192 = vpack.c.b16 %v162, %v160
    %v193 = vpack.c.b16 %v165, %v163
    %v194 = vpack.c.b16 %v166, %v164
    %v195 = vpack.c.b16 %v169, %v167
    %v196 = vpack.c.b16 %v170, %v168
    %v197 = vpack.c.b16 %v173, %v171
    %v198 = vpack.c.b16 %v174, %v172
    %v199 = vpack.c.b16 %v177, %v175
    %v200 = vpack.c.b16 %v178, %v176
    %v201 = vpack.c.b16 %v181, %v179
    %v202 = vpack.c.b16 %v182, %v180
    %v203 = vpack.c.b16 %v185, %v183
    %v204 = vpack.c.b16 %v186, %v184
    %v205 = vpack.c.b16 %v189, %v187
    %v206 = vpack.c.b16 %v190, %v188
    %223 = vmatprep.subr.bf16.mxu0 %v206
    %224 = vmatpush1.bf16.msra.mxu0 %v205
    %225 = vmatprep.subr.bf16.mxu0 %v204
    %226 = vmatpush1.bf16.msra.mxu0 %v203
    %227 = vmatprep.subr.bf16.mxu0 %v202
    %228 = vmatpush1.bf16.msra.mxu0 %v201
    %229 = vmatprep.subr.bf16.mxu0 %v200
    %230 = vmatpush1.bf16.msra.mxu0 %v199
    %231 = vmatprep.subr.bf16.mxu0 %v198
    %232 = vmatpush1.bf16.msra.mxu0 %v197
    %233 = vmatprep.subr.bf16.mxu0 %v196
    %234 = vmatpush1.bf16.msra.mxu0 %v195
    %235 = vmatprep.subr.bf16.mxu0 %v194
    %236 = vmatpush1.bf16.msra.mxu0 %v193
    %237 = vmatprep.subr.bf16.mxu0 %v192
    %238 = vmatpush1.bf16.msra.mxu0 %v191
    %239 = vmatprep.subr.bf16.mxu0 0
    %240 = vmatpush2.bf16.msra.mxu0 0
    %241 = vmatprep.subr.bf16.mxu0 0
    %242 = vmatpush2.bf16.msra.mxu0 0
    %243 = vmatprep.subr.bf16.mxu0 0
    %244 = vmatpush2.bf16.msra.mxu0 0
    %245 = vmatprep.subr.bf16.mxu0 0
    %246 = vmatpush2.bf16.msra.mxu0 0
    %247 = vmatprep.subr.bf16.mxu0 0
    %248 = vmatpush2.bf16.msra.mxu0 0
    %249 = vmatprep.subr.bf16.mxu0 0
    %250 = vmatpush2.bf16.msra.mxu0 0
    %251 = vmatprep.subr.bf16.mxu0 0
    %252 = vmatpush2.bf16.msra.mxu0 0
    %253 = vmatprep.subr.bf16.mxu0 0
    %254 = vmatpush2.bf16.msra.mxu0 0
    %255 = vmatprep.mubr.bf16.mxu0 0
    %256 = vmatmul.mubr.bf16.gmra.mxu0 %v114
    %v257 = vpop.f32.mrf.mxu0
    %v258 = vadd.f32 %v136, %v257
    %v259 = vpop.f32.mrf.mxu0
    %v260 = vadd.f32 %v140, %v259
    %v261 = vpop.f32.mrf.mxu0
    %v262 = vpop.f32.mrf.mxu0
    %263 = vdwg.mxu0
    %v264 = vmax.f32 %v258, 0.0
    %v265 = vmax.f32 %v260, 0.0
    %v266 = vpack.c.bf16 %v264, %v264
    %v267 = vpack.c.bf16 %v265, %v265
    %v268 = vld [vmem:[%s5] sm:$0xff]
    %v269 = vld [vmem:[%s5 + $0x8] sm:$0xff]
    %v270 = vld [vmem:[%s5 + $0x10] sm:$0xff]
    %v271 = vld [vmem:[%s5 + $0x18] sm:$0xf]
    %v272 = vld [vmem:[%s5 + $0x1c] sm:$0xff]
    %v273 = vld [vmem:[%s5 + $0x24] sm:$0xff]
    %v274 = vld [vmem:[%s5 + $0x2c] sm:$0xff]
    %v275 = vld [vmem:[%s5 + $0x34] sm:$0xf]
    %v276 = vld [vmem:[%s5 + $0x38] sm:$0xff]
    %v277 = vld [vmem:[%s5 + $0x40] sm:$0xff]
    %v278 = vld [vmem:[%s5 + $0x48] sm:$0xff]
    %v279 = vld [vmem:[%s5 + $0x50] sm:$0xf]
    %v280 = vld [vmem:[%s5 + $0x54] sm:$0xff]
    %v281 = vld [vmem:[%s5 + $0x5c] sm:$0xff]
    %v282 = vld [vmem:[%s5 + $0x64] sm:$0xff]
    %v283 = vld [vmem:[%s5 + $0x6c] sm:$0xf]
    %v284 = vld [vmem:[%s5 + $0x70] sm:$0xff]
    %v285 = vld [vmem:[%s5 + $0x78] sm:$0xff]
    %v286 = vld [vmem:[%s5 + $0x80] sm:$0xff]
    %v287 = vld [vmem:[%s5 + $0x88] sm:$0xf]
    %v288 = vld [vmem:[%s5 + $0x8c] sm:$0xff]
    %v289 = vld [vmem:[%s5 + $0x94] sm:$0xff]
    %v290 = vld [vmem:[%s5 + $0x9c] sm:$0xff]
    %v291 = vld [vmem:[%s5 + $0xa4] sm:$0xf]
    %v292 = vld [vmem:[%s5 + $0xa8] sm:$0xff]
    %v293 = vld [vmem:[%s5 + $0xb0] sm:$0xff]
    %v294 = vld [vmem:[%s5 + $0xb8] sm:$0xff]
    %v295 = vld [vmem:[%s5 + $0xc0] sm:$0xf]
    %v296 = vld [vmem:[%s5 + $0xc4] sm:$0xff]
    %v297 = vld [vmem:[%s5 + $0xcc] sm:$0xff]
    %v298 = vld [vmem:[%s5 + $0xd4] sm:$0xff]
    %v299 = vld [vmem:[%s5 + $0xdc] sm:$0xf]
    %v300 = vld [vmem:[%s5 + $0xe0] sm:$0xff]
    %v301 = vld [vmem:[%s5 + $0xe8] sm:$0xff]
    %v302 = vld [vmem:[%s5 + $0xf0] sm:$0xff]
    %v303 = vld [vmem:[%s5 + $0xf8] sm:$0xf]
    %v304 = vld [vmem:[%s5 + $0xfc] sm:$0xff]
    %v305 = vld [vmem:[%s5 + $0x104] sm:$0xff]
    %v306 = vld [vmem:[%s5 + $0x10c] sm:$0xff]
    %v307 = vld [vmem:[%s5 + $0x114] sm:$0xf]
    %v308 = vld [vmem:[%s5 + $0x118] sm:$0xff]
    %v309 = vld [vmem:[%s5 + $0x120] sm:$0xff]
    %v310 = vld [vmem:[%s5 + $0x128] sm:$0xff]
    %v311 = vld [vmem:[%s5 + $0x130] sm:$0xf]
    %v312 = vld [vmem:[%s5 + $0x134] sm:$0xff]
    %v313 = vld [vmem:[%s5 + $0x13c] sm:$0xff]
    %v314 = vld [vmem:[%s5 + $0x144] sm:$0xff]
    %v315 = vld [vmem:[%s5 + $0x14c] sm:$0xf]
    %v316 = vld [vmem:[%s5 + $0x150] sm:$0xff]
    %v317 = vld [vmem:[%s5 + $0x158] sm:$0xff]
    %v318 = vld [vmem:[%s5 + $0x160] sm:$0xff]
    %v319 = vld [vmem:[%s5 + $0x168] sm:$0xf]
    %v320 = vld [vmem:[%s5 + $0x16c] sm:$0xff]
    %v321 = vld [vmem:[%s5 + $0x174] sm:$0xff]
    %v322 = vld [vmem:[%s5 + $0x17c] sm:$0xff]
    %v323 = vld [vmem:[%s5 + $0x184] sm:$0xf]
    %v324 = vld [vmem:[%s5 + $0x188] sm:$0xff]
    %v325 = vld [vmem:[%s5 + $0x190] sm:$0xff]
    %v326 = vld [vmem:[%s5 + $0x198] sm:$0xff]
    %v327 = vld [vmem:[%s5 + $0x1a0] sm:$0xf]
    %v328 = vld [vmem:[%s5 + $0x1a4] sm:$0xff]
    %v329 = vld [vmem:[%s5 + $0x1ac] sm:$0xff]
    %v330 = vld [vmem:[%s5 + $0x1b4] sm:$0xff]
    %v331 = vld [vmem:[%s5 + $0x1bc] sm:$0xf]
    %v332 = vld [vmem:[%s5 + $0x1c0] sm:$0xff]
    %v333 = vld [vmem:[%s5 + $0x1c8] sm:$0xff]
    %v334 = vld [vmem:[%s5 + $0x1d0] sm:$0xff]
    %v335 = vld [vmem:[%s5 + $0x1d8] sm:$0xf]
    %v336 = vld [vmem:[%s5 + $0x1dc] sm:$0xff]
    %v337 = vld [vmem:[%s5 + $0x1e4] sm:$0xff]
    %v338 = vld [vmem:[%s5 + $0x1ec] sm:$0xff]
    %v339 = vld [vmem:[%s5 + $0x1f4] sm:$0xf]
    %v340 = vld [vmem:[%s5 + $0x1f8] sm:$0xff]
    %v341 = vld [vmem:[%s5 + $0x200] sm:$0xff]
    %v342 = vld [vmem:[%s5 + $0x208] sm:$0xff]
    %v343 = vld [vmem:[%s5 + $0x210] sm:$0xf]
    %v344 = vld [vmem:[%s5 + $0x214] sm:$0xff]
    %v345 = vld [vmem:[%s5 + $0x21c] sm:$0xff]
    %v346 = vld [vmem:[%s5 + $0x224] sm:$0xff]
    %v347 = vld [vmem:[%s5 + $0x22c] sm:$0xf]
    %v348 = vld [vmem:[%s5 + $0x230] sm:$0xff]
    %v349 = vld [vmem:[%s5 + $0x238] sm:$0xff]
    %v350 = vld [vmem:[%s5 + $0x240] sm:$0xff]
    %v351 = vld [vmem:[%s5 + $0x248] sm:$0xf]
    %v352 = vld [vmem:[%s5 + $0x24c] sm:$0xff]
    %v353 = vld [vmem:[%s5 + $0x254] sm:$0xff]
    %v354 = vld [vmem:[%s5 + $0x25c] sm:$0xff]
    %v355 = vld [vmem:[%s5 + $0x264] sm:$0xf]
    %v356 = vld [vmem:[%s5 + $0x268] sm:$0xff]
    %v357 = vld [vmem:[%s5 + $0x270] sm:$0xff]
    %v358 = vld [vmem:[%s5 + $0x278] sm:$0xff]
    %v359 = vld [vmem:[%s5 + $0x280] sm:$0xf]
    %v360 = vld [vmem:[%s5 + $0x284] sm:$0xff]
    %v361 = vld [vmem:[%s5 + $0x28c] sm:$0xff]
    %v362 = vld [vmem:[%s5 + $0x294] sm:$0xff]
    %v363 = vld [vmem:[%s5 + $0x29c] sm:$0xf]
    %v364 = vld [vmem:[%s5 + $0x2a0] sm:$0xff]
    %v365 = vld [vmem:[%s5 + $0x2a8] sm:$0xff]
    %v366 = vld [vmem:[%s5 + $0x2b0] sm:$0xff]
    %v367 = vld [vmem:[%s5 + $0x2b8] sm:$0xf]
    %v368 = vld [vmem:[%s5 + $0x2bc] sm:$0xff]
    %v369 = vld [vmem:[%s5 + $0x2c4] sm:$0xff]
    %v370 = vld [vmem:[%s5 + $0x2cc] sm:$0xff]
    %v371 = vld [vmem:[%s5 + $0x2d4] sm:$0xf]
    %v372 = vld [vmem:[%s5 + $0x2d8] sm:$0xff]
    %v373 = vld [vmem:[%s5 + $0x2e0] sm:$0xff]
    %v374 = vld [vmem:[%s5 + $0x2e8] sm:$0xff]
    %v375 = vld [vmem:[%s5 + $0x2f0] sm:$0xf]
    %v376 = vld [vmem:[%s5 + $0x2f4] sm:$0xff]
    %v377 = vld [vmem:[%s5 + $0x2fc] sm:$0xff]
    %v378 = vld [vmem:[%s5 + $0x304] sm:$0xff]
    %v379 = vld [vmem:[%s5 + $0x30c] sm:$0xf]
    %v380 = vld [vmem:[%s5 + $0x310] sm:$0xff]
    %v381 = vld [vmem:[%s5 + $0x318] sm:$0xff]
    %v382 = vld [vmem:[%s5 + $0x320] sm:$0xff]
    %v383 = vld [vmem:[%s5 + $0x328] sm:$0xf]
    %v384 = vld [vmem:[%s5 + $0x32c] sm:$0xff]
    %v385 = vld [vmem:[%s5 + $0x334] sm:$0xff]
    %v386 = vld [vmem:[%s5 + $0x33c] sm:$0xff]
    %v387 = vld [vmem:[%s5 + $0x344] sm:$0xf]
    %v388 = vld [vmem:[%s5 + $0x348] sm:$0xff]
    %v389 = vld [vmem:[%s5 + $0x350] sm:$0xff]
    %v390 = vld [vmem:[%s5 + $0x358] sm:$0xff]
    %v391 = vld [vmem:[%s5 + $0x360] sm:$0xf]
    %v392 = vld [vmem:[%s5 + $0x364] sm:$0xff]
    %v393 = vld [vmem:[%s5 + $0x36c] sm:$0xff]
    %v394 = vld [vmem:[%s5 + $0x374] sm:$0xff]
    %v395 = vld [vmem:[%s5 + $0x37c] sm:$0xf]
    %v396 = vld [vmem:[%s6] sm:$0x7f]
    %v398 = vlaneseq
    %v399 = vshrl.u32 %v398, 7
    %v400 = vsub.s32 0, %v399
    %v401 = vrot.slane %v396, %v400
    %v402 = vlaneseq
    %v403 = vshrl.u32 %v402, 7
    %v404 = vsub.s32 1, %v403
    %v405 = vrot.slane %v396, %v404
    %v406 = vlaneseq
    %v407 = vshrl.u32 %v406, 7
    %v408 = vsub.s32 2, %v407
    %v409 = vrot.slane %v396, %v408
    %v410 = vlaneseq
    %v411 = vshrl.u32 %v410, 7
    %v412 = vsub.s32 3, %v411
    %v413 = vrot.slane %v396, %v412
    %v414 = vlaneseq
    %v415 = vshrl.u32 %v414, 7
    %v416 = vsub.s32 4, %v415
    %v417 = vrot.slane %v396, %v416
    %v418 = vlaneseq
    %v419 = vshrl.u32 %v418, 7
    %v420 = vsub.s32 5, %v419
    %v421 = vrot.slane %v396, %v420
    %v422 = vlaneseq
    %v423 = vshrl.u32 %v422, 7
    %v424 = vsub.s32 6, %v423
    %v425 = vrot.slane %v396, %v424
    %v561 = vunpack.c.l.b16 %v268
    %v562 = vunpack.c.h.b16 %v268
    %v563 = vunpack.c.l.b16 %v269
    %v564 = vunpack.c.h.b16 %v269
    %v565 = vunpack.c.l.b16 %v270
    %v566 = vunpack.c.h.b16 %v270
    %v567 = vunpack.c.l.b16 %v271
    %v568 = vunpack.c.l.b16 %v272
    %v569 = vunpack.c.h.b16 %v272
    %v570 = vunpack.c.l.b16 %v273
    %v571 = vunpack.c.h.b16 %v273
    %v572 = vunpack.c.l.b16 %v274
    %v573 = vunpack.c.h.b16 %v274
    %v574 = vunpack.c.l.b16 %v275
    %v575 = vunpack.c.l.b16 %v276
    %v576 = vunpack.c.h.b16 %v276
    %v577 = vunpack.c.l.b16 %v277
    %v578 = vunpack.c.h.b16 %v277
    %v579 = vunpack.c.l.b16 %v278
    %v580 = vunpack.c.h.b16 %v278
    %v581 = vunpack.c.l.b16 %v279
    %v582 = vunpack.c.l.b16 %v280
    %v583 = vunpack.c.h.b16 %v280
    %v584 = vunpack.c.l.b16 %v281
    %v585 = vunpack.c.h.b16 %v281
    %v586 = vunpack.c.l.b16 %v282
    %v587 = vunpack.c.h.b16 %v282
    %v588 = vunpack.c.l.b16 %v283
    %v589 = vunpack.c.l.b16 %v284
    %v590 = vunpack.c.h.b16 %v284
    %v591 = vunpack.c.l.b16 %v285
    %v592 = vunpack.c.h.b16 %v285
    %v593 = vunpack.c.l.b16 %v286
    %v594 = vunpack.c.h.b16 %v286
    %v595 = vunpack.c.l.b16 %v287
    %v596 = vunpack.c.l.b16 %v288
    %v597 = vunpack.c.h.b16 %v288
    %v598 = vunpack.c.l.b16 %v289
    %v599 = vunpack.c.h.b16 %v289
    %v600 = vunpack.c.l.b16 %v290
    %v601 = vunpack.c.h.b16 %v290
    %v602 = vunpack.c.l.b16 %v291
    %v603 = vunpack.c.l.b16 %v292
    %v604 = vunpack.c.h.b16 %v292
    %v605 = vunpack.c.l.b16 %v293
    %v606 = vunpack.c.h.b16 %v293
    %v607 = vunpack.c.l.b16 %v294
    %v608 = vunpack.c.h.b16 %v294
    %v609 = vunpack.c.l.b16 %v295
    %v610 = vunpack.c.l.b16 %v296
    %v611 = vunpack.c.h.b16 %v296
    %v612 = vunpack.c.l.b16 %v297
    %v613 = vunpack.c.h.b16 %v297
    %v614 = vunpack.c.l.b16 %v298
    %v615 = vunpack.c.h.b16 %v298
    %v616 = vunpack.c.l.b16 %v299
    %v617 = vunpack.c.l.b16 %v300
    %v618 = vunpack.c.h.b16 %v300
    %v619 = vunpack.c.l.b16 %v301
    %v620 = vunpack.c.h.b16 %v301
    %v621 = vunpack.c.l.b16 %v302
    %v622 = vunpack.c.h.b16 %v302
    %v623 = vunpack.c.l.b16 %v303
    %v624 = vunpack.c.l.b16 %v304
    %v625 = vunpack.c.h.b16 %v304
    %v626 = vunpack.c.l.b16 %v305
    %v627 = vunpack.c.h.b16 %v305
    %v628 = vunpack.c.l.b16 %v306
    %v629 = vunpack.c.h.b16 %v306
    %v630 = vunpack.c.l.b16 %v307
    %v631 = vunpack.c.l.b16 %v308
    %v632 = vunpack.c.h.b16 %v308
    %v633 = vunpack.c.l.b16 %v309
    %v634 = vunpack.c.h.b16 %v309
    %v635 = vunpack.c.l.b16 %v310
    %v636 = vunpack.c.h.b16 %v310
    %v637 = vunpack.c.l.b16 %v311
    %v638 = vunpack.c.l.b16 %v312
    %v639 = vunpack.c.h.b16 %v312
    %v640 = vunpack.c.l.b16 %v313
    %v641 = vunpack.c.h.b16 %v313
    %v642 = vunpack.c.l.b16 %v314
    %v643 = vunpack.c.h.b16 %v314
    %v644 = vunpack.c.l.b16 %v315
    %v645 = vunpack.c.l.b16 %v316
    %v646 = vunpack.c.h.b16 %v316
    %v647 = vunpack.c.l.b16 %v317
    %v648 = vunpack.c.h.b16 %v317
    %v649 = vunpack.c.l.b16 %v318
    %v650 = vunpack.c.h.b16 %v318
    %v651 = vunpack.c.l.b16 %v319
    %v652 = vunpack.c.l.b16 %v320
    %v653 = vunpack.c.h.b16 %v320
    %v654 = vunpack.c.l.b16 %v321
    %v655 = vunpack.c.h.b16 %v321
    %v656 = vunpack.c.l.b16 %v322
    %v657 = vunpack.c.h.b16 %v322
    %v658 = vunpack.c.l.b16 %v323
    %v659 = vunpack.c.l.b16 %v324
    %v660 = vunpack.c.h.b16 %v324
    %v661 = vunpack.c.l.b16 %v325
    %v662 = vunpack.c.h.b16 %v325
    %v663 = vunpack.c.l.b16 %v326
    %v664 = vunpack.c.h.b16 %v326
    %v665 = vunpack.c.l.b16 %v327
    %v666 = vunpack.c.l.b16 %v328
    %v667 = vunpack.c.h.b16 %v328
    %v668 = vunpack.c.l.b16 %v329
    %v669 = vunpack.c.h.b16 %v329
    %v670 = vunpack.c.l.b16 %v330
    %v671 = vunpack.c.h.b16 %v330
    %v672 = vunpack.c.l.b16 %v331
    %v673 = vunpack.c.l.b16 %v332
    %v674 = vunpack.c.h.b16 %v332
    %v675 = vunpack.c.l.b16 %v333
    %v676 = vunpack.c.h.b16 %v333
    %v677 = vunpack.c.l.b16 %v334
    %v678 = vunpack.c.h.b16 %v334
    %v679 = vunpack.c.l.b16 %v335
    %v680 = vunpack.c.l.b16 %v336
    %v681 = vunpack.c.h.b16 %v336
    %v682 = vunpack.c.l.b16 %v337
    %v683 = vunpack.c.h.b16 %v337
    %v684 = vunpack.c.l.b16 %v338
    %v685 = vunpack.c.h.b16 %v338
    %v686 = vunpack.c.l.b16 %v339
    %v687 = vunpack.c.l.b16 %v340
    %v688 = vunpack.c.h.b16 %v340
    %v689 = vunpack.c.l.b16 %v341
    %v690 = vunpack.c.h.b16 %v341
    %v691 = vunpack.c.l.b16 %v342
    %v692 = vunpack.c.h.b16 %v342
    %v693 = vunpack.c.l.b16 %v343
    %v694 = vunpack.c.l.b16 %v344
    %v695 = vunpack.c.h.b16 %v344
    %v696 = vunpack.c.l.b16 %v345
    %v697 = vunpack.c.h.b16 %v345
    %v698 = vunpack.c.l.b16 %v346
    %v699 = vunpack.c.h.b16 %v346
    %v700 = vunpack.c.l.b16 %v347
    %v701 = vunpack.c.l.b16 %v348
    %v702 = vunpack.c.h.b16 %v348
    %v703 = vunpack.c.l.b16 %v349
    %v704 = vunpack.c.h.b16 %v349
    %v705 = vunpack.c.l.b16 %v350
    %v706 = vunpack.c.h.b16 %v350
    %v707 = vunpack.c.l.b16 %v351
    %v708 = vunpack.c.l.b16 %v352
    %v709 = vunpack.c.h.b16 %v352
    %v710 = vunpack.c.l.b16 %v353
    %v711 = vunpack.c.h.b16 %v353
    %v712 = vunpack.c.l.b16 %v354
    %v713 = vunpack.c.h.b16 %v354
    %v714 = vunpack.c.l.b16 %v355
    %v715 = vunpack.c.l.b16 %v356
    %v716 = vunpack.c.h.b16 %v356
    %v717 = vunpack.c.l.b16 %v357
    %v718 = vunpack.c.h.b16 %v357
    %v719 = vunpack.c.l.b16 %v358
    %v720 = vunpack.c.h.b16 %v358
    %v721 = vunpack.c.l.b16 %v359
    %v722 = vunpack.c.l.b16 %v360
    %v723 = vunpack.c.h.b16 %v360
    %v724 = vunpack.c.l.b16 %v361
    %v725 = vunpack.c.h.b16 %v361
    %v726 = vunpack.c.l.b16 %v362
    %v727 = vunpack.c.h.b16 %v362
    %v728 = vunpack.c.l.b16 %v363
    %v729 = vunpack.c.l.b16 %v364
    %v730 = vunpack.c.h.b16 %v364
    %v731 = vunpack.c.l.b16 %v365
    %v732 = vunpack.c.h.b16 %v365
    %v733 = vunpack.c.l.b16 %v366
    %v734 = vunpack.c.h.b16 %v366
    %v735 = vunpack.c.l.b16 %v367
    %v736 = vunpack.c.l.b16 %v368
    %v737 = vunpack.c.h.b16 %v368
    %v738 = vunpack.c.l.b16 %v369
    %v739 = vunpack.c.h.b16 %v369
    %v740 = vunpack.c.l.b16 %v370
    %v741 = vunpack.c.h.b16 %v370
    %v742 = vunpack.c.l.b16 %v371
    %v743 = vunpack.c.l.b16 %v372
    %v744 = vunpack.c.h.b16 %v372
    %v745 = vunpack.c.l.b16 %v373
    %v746 = vunpack.c.h.b16 %v373
    %v747 = vunpack.c.l.b16 %v374
    %v748 = vunpack.c.h.b16 %v374
    %v749 = vunpack.c.l.b16 %v375
    %v750 = vunpack.c.l.b16 %v376
    %v751 = vunpack.c.h.b16 %v376
    %v752 = vunpack.c.l.b16 %v377
    %v753 = vunpack.c.h.b16 %v377
    %v754 = vunpack.c.l.b16 %v378
    %v755 = vunpack.c.h.b16 %v378
    %v756 = vunpack.c.l.b16 %v379
    %v757 = vunpack.c.l.b16 %v380
    %v758 = vunpack.c.h.b16 %v380
    %v759 = vunpack.c.l.b16 %v381
    %v760 = vunpack.c.h.b16 %v381
    %v761 = vunpack.c.l.b16 %v382
    %v762 = vunpack.c.h.b16 %v382
    %v763 = vunpack.c.l.b16 %v383
    %v764 = vunpack.c.l.b16 %v384
    %v765 = vunpack.c.h.b16 %v384
    %v766 = vunpack.c.l.b16 %v385
    %v767 = vunpack.c.h.b16 %v385
    %v768 = vunpack.c.l.b16 %v386
    %v769 = vunpack.c.h.b16 %v386
    %v770 = vunpack.c.l.b16 %v387
    %v771 = vunpack.c.l.b16 %v388
    %v772 = vunpack.c.h.b16 %v388
    %v773 = vunpack.c.l.b16 %v389
    %v774 = vunpack.c.h.b16 %v389
    %v775 = vunpack.c.l.b16 %v390
    %v776 = vunpack.c.h.b16 %v390
    %v777 = vunpack.c.l.b16 %v391
    %v778 = vunpack.c.l.b16 %v392
    %v779 = vunpack.c.h.b16 %v392
    %v780 = vunpack.c.l.b16 %v393
    %v781 = vunpack.c.h.b16 %v393
    %v782 = vunpack.c.l.b16 %v394
    %v783 = vunpack.c.h.b16 %v394
    %v784 = vunpack.c.l.b16 %v395
    %v785 = vpack.c.b16 %v568, %v561
    %v786 = vpack.c.b16 %v569, %v562
    %v787 = vpack.c.b16 %v570, %v563
    %v788 = vpack.c.b16 %v571, %v564
    %v789 = vpack.c.b16 %v572, %v565
    %v790 = vpack.c.b16 %v573, %v566
    %v791 = vpack.c.b16 %v574, %v567
    %v792 = vpack.c.b16 %v582, %v575
    %v793 = vpack.c.b16 %v583, %v576
    %v794 = vpack.c.b16 %v584, %v577
    %v795 = vpack.c.b16 %v585, %v578
    %v796 = vpack.c.b16 %v586, %v579
    %v797 = vpack.c.b16 %v587, %v580
    %v798 = vpack.c.b16 %v588, %v581
    %v799 = vpack.c.b16 %v596, %v589
    %v800 = vpack.c.b16 %v597, %v590
    %v801 = vpack.c.b16 %v598, %v591
    %v802 = vpack.c.b16 %v599, %v592
    %v803 = vpack.c.b16 %v600, %v593
    %v804 = vpack.c.b16 %v601, %v594
    %v805 = vpack.c.b16 %v602, %v595
    %v806 = vpack.c.b16 %v610, %v603
    %v807 = vpack.c.b16 %v611, %v604
    %v808 = vpack.c.b16 %v612, %v605
    %v809 = vpack.c.b16 %v613, %v606
    %v810 = vpack.c.b16 %v614, %v607
    %v811 = vpack.c.b16 %v615, %v608
    %v812 = vpack.c.b16 %v616, %v609
    %v813 = vpack.c.b16 %v624, %v617
    %v814 = vpack.c.b16 %v625, %v618
    %v815 = vpack.c.b16 %v626, %v619
    %v816 = vpack.c.b16 %v627, %v620
    %v817 = vpack.c.b16 %v628, %v621
    %v818 = vpack.c.b16 %v629, %v622
    %v819 = vpack.c.b16 %v630, %v623
    %v820 = vpack.c.b16 %v638, %v631
    %v821 = vpack.c.b16 %v639, %v632
    %v822 = vpack.c.b16 %v640, %v633
    %v823 = vpack.c.b16 %v641, %v634
    %v824 = vpack.c.b16 %v642, %v635
    %v825 = vpack.c.b16 %v643, %v636
    %v826 = vpack.c.b16 %v644, %v637
    %v827 = vpack.c.b16 %v652, %v645
    %v828 = vpack.c.b16 %v653, %v646
    %v829 = vpack.c.b16 %v654, %v647
    %v830 = vpack.c.b16 %v655, %v648
    %v831 = vpack.c.b16 %v656, %v649
    %v832 = vpack.c.b16 %v657, %v650
    %v833 = vpack.c.b16 %v658, %v651
    %v834 = vpack.c.b16 %v666, %v659
    %v835 = vpack.c.b16 %v667, %v660
    %v836 = vpack.c.b16 %v668, %v661
    %v837 = vpack.c.b16 %v669, %v662
    %v838 = vpack.c.b16 %v670, %v663
    %v839 = vpack.c.b16 %v671, %v664
    %v840 = vpack.c.b16 %v672, %v665
    %v841 = vpack.c.b16 %v680, %v673
    %v842 = vpack.c.b16 %v681, %v674
    %v843 = vpack.c.b16 %v682, %v675
    %v844 = vpack.c.b16 %v683, %v676
    %v845 = vpack.c.b16 %v684, %v677
    %v846 = vpack.c.b16 %v685, %v678
    %v847 = vpack.c.b16 %v686, %v679
    %v848 = vpack.c.b16 %v694, %v687
    %v849 = vpack.c.b16 %v695, %v688
    %v850 = vpack.c.b16 %v696, %v689
    %v851 = vpack.c.b16 %v697, %v690
    %v852 = vpack.c.b16 %v698, %v691
    %v853 = vpack.c.b16 %v699, %v692
    %v854 = vpack.c.b16 %v700, %v693
    %v855 = vpack.c.b16 %v708, %v701
    %v856 = vpack.c.b16 %v709, %v702
    %v857 = vpack.c.b16 %v710, %v703
    %v858 = vpack.c.b16 %v711, %v704
    %v859 = vpack.c.b16 %v712, %v705
    %v860 = vpack.c.b16 %v713, %v706
    %v861 = vpack.c.b16 %v714, %v707
    %v862 = vpack.c.b16 %v722, %v715
    %v863 = vpack.c.b16 %v723, %v716
    %v864 = vpack.c.b16 %v724, %v717
    %v865 = vpack.c.b16 %v725, %v718
    %v866 = vpack.c.b16 %v726, %v719
    %v867 = vpack.c.b16 %v727, %v720
    %v868 = vpack.c.b16 %v728, %v721
    %v869 = vpack.c.b16 %v736, %v729
    %v870 = vpack.c.b16 %v737, %v730
    %v871 = vpack.c.b16 %v738, %v731
    %v872 = vpack.c.b16 %v739, %v732
    %v873 = vpack.c.b16 %v740, %v733
    %v874 = vpack.c.b16 %v741, %v734
    %v875 = vpack.c.b16 %v742, %v735
    %v876 = vpack.c.b16 %v750, %v743
    %v877 = vpack.c.b16 %v751, %v744
    %v878 = vpack.c.b16 %v752, %v745
    %v879 = vpack.c.b16 %v753, %v746
    %v880 = vpack.c.b16 %v754, %v747
    %v881 = vpack.c.b16 %v755, %v748
    %v882 = vpack.c.b16 %v756, %v749
    %v883 = vpack.c.b16 %v764, %v757
    %v884 = vpack.c.b16 %v765, %v758
    %v885 = vpack.c.b16 %v766, %v759
    %v886 = vpack.c.b16 %v767, %v760
    %v887 = vpack.c.b16 %v768, %v761
    %v888 = vpack.c.b16 %v769, %v762
    %v889 = vpack.c.b16 %v770, %v763
    %v890 = vpack.c.b16 %v778, %v771
    %v891 = vpack.c.b16 %v779, %v772
    %v892 = vpack.c.b16 %v780, %v773
    %v893 = vpack.c.b16 %v781, %v774
    %v894 = vpack.c.b16 %v782, %v775
    %v895 = vpack.c.b16 %v783, %v776
    %v896 = vpack.c.b16 %v784, %v777
    %1009 = vmatprep.subr.bf16.mxu0 %v835
    %1010 = vmatpush1.bf16.msra.mxu0 %v834
    %1011 = vmatprep.subr.bf16.mxu0 %v828
    %1012 = vmatpush1.bf16.msra.mxu0 %v827
    %1013 = vmatprep.subr.bf16.mxu0 %v821
    %1014 = vmatpush1.bf16.msra.mxu0 %v820
    %1015 = vmatprep.subr.bf16.mxu0 %v814
    %1016 = vmatpush1.bf16.msra.mxu0 %v813
    %1017 = vmatprep.subr.bf16.mxu0 %v807
    %1018 = vmatpush1.bf16.msra.mxu0 %v806
    %1019 = vmatprep.subr.bf16.mxu0 %v800
    %1020 = vmatpush1.bf16.msra.mxu0 %v799
    %1021 = vmatprep.subr.bf16.mxu0 %v793
    %1022 = vmatpush1.bf16.msra.mxu0 %v792
    %1023 = vmatprep.subr.bf16.mxu0 %v786
    %1024 = vmatpush1.bf16.msra.mxu0 %v785
    %1025 = vmatprep.subr.bf16.mxu0 %v891
    %1026 = vmatpush2.bf16.msra.mxu0 %v890
    %1027 = vmatprep.subr.bf16.mxu0 %v884
    %1028 = vmatpush2.bf16.msra.mxu0 %v883
    %1029 = vmatprep.subr.bf16.mxu0 %v877
    %1030 = vmatpush2.bf16.msra.mxu0 %v876
    %1031 = vmatprep.subr.bf16.mxu0 %v870
    %1032 = vmatpush2.bf16.msra.mxu0 %v869
    %1033 = vmatprep.subr.bf16.mxu0 %v863
    %1034 = vmatpush2.bf16.msra.mxu0 %v862
    %1035 = vmatprep.subr.bf16.mxu0 %v856
    %1036 = vmatpush2.bf16.msra.mxu0 %v855
    %1037 = vmatprep.subr.bf16.mxu0 %v849
    %1038 = vmatpush2.bf16.msra.mxu0 %v848
    %1039 = vmatprep.subr.bf16.mxu0 %v842
    %1040 = vmatpush2.bf16.msra.mxu0 %v841
    %1041 = vmatprep.mubr.bf16.mxu0 %v267
    %1042 = vmatmul.mubr.bf16.gmra.mxu0 %v266
    %v1043 = vpop.f32.mrf.mxu0
    %v1044 = vadd.f32 %v401, %v1043
    %v1045 = vpop.f32.mrf.mxu0
    %v1046 = vadd.f32 %v405, %v1045
    %v1047 = vpop.f32.mrf.mxu0
    %v1048 = vpop.f32.mrf.mxu0
    %1049 = vdwg.mxu0
    %1050 = vmatprep.subr.bf16.mxu0 %v837
    %1051 = vmatpush1.bf16.msra.mxu0 %v836
    %1052 = vmatprep.subr.bf16.mxu0 %v830
    %1053 = vmatpush1.bf16.msra.mxu0 %v829
    %1054 = vmatprep.subr.bf16.mxu0 %v823
    %1055 = vmatpush1.bf16.msra.mxu0 %v822
    %1056 = vmatprep.subr.bf16.mxu0 %v816
    %1057 = vmatpush1.bf16.msra.mxu0 %v815
    %1058 = vmatprep.subr.bf16.mxu0 %v809
    %1059 = vmatpush1.bf16.msra.mxu0 %v808
    %1060 = vmatprep.subr.bf16.mxu0 %v802
    %1061 = vmatpush1.bf16.msra.mxu0 %v801
    %1062 = vmatprep.subr.bf16.mxu0 %v795
    %1063 = vmatpush1.bf16.msra.mxu0 %v794
    %1064 = vmatprep.subr.bf16.mxu0 %v788
    %1065 = vmatpush1.bf16.msra.mxu0 %v787
    %1066 = vmatprep.subr.bf16.mxu0 %v893
    %1067 = vmatpush2.bf16.msra.mxu0 %v892
    %1068 = vmatprep.subr.bf16.mxu0 %v886
    %1069 = vmatpush2.bf16.msra.mxu0 %v885
    %1070 = vmatprep.subr.bf16.mxu0 %v879
    %1071 = vmatpush2.bf16.msra.mxu0 %v878
    %1072 = vmatprep.subr.bf16.mxu0 %v872
    %1073 = vmatpush2.bf16.msra.mxu0 %v871
    %1074 = vmatprep.subr.bf16.mxu0 %v865
    %1075 = vmatpush2.bf16.msra.mxu0 %v864
    %1076 = vmatprep.subr.bf16.mxu0 %v858
    %1077 = vmatpush2.bf16.msra.mxu0 %v857
    %1078 = vmatprep.subr.bf16.mxu0 %v851
    %1079 = vmatpush2.bf16.msra.mxu0 %v850
    %1080 = vmatprep.subr.bf16.mxu0 %v844
    %1081 = vmatpush2.bf16.msra.mxu0 %v843
    %1082 = vmatprep.mubr.bf16.mxu0 %v267
    %1083 = vmatmul.mubr.bf16.gmra.mxu0 %v266
    %v1084 = vpop.f32.mrf.mxu0
    %v1085 = vadd.f32 %v409, %v1084
    %v1086 = vpop.f32.mrf.mxu0
    %v1087 = vadd.f32 %v413, %v1086
    %v1088 = vpop.f32.mrf.mxu0
    %v1089 = vpop.f32.mrf.mxu0
    %1090 = vdwg.mxu0
    %1091 = vmatprep.subr.bf16.mxu0 %v839
    %1092 = vmatpush1.bf16.msra.mxu0 %v838
    %1093 = vmatprep.subr.bf16.mxu0 %v832
    %1094 = vmatpush1.bf16.msra.mxu0 %v831
    %1095 = vmatprep.subr.bf16.mxu0 %v825
    %1096 = vmatpush1.bf16.msra.mxu0 %v824
    %1097 = vmatprep.subr.bf16.mxu0 %v818
    %1098 = vmatpush1.bf16.msra.mxu0 %v817
    %1099 = vmatprep.subr.bf16.mxu0 %v811
    %1100 = vmatpush1.bf16.msra.mxu0 %v810
    %1101 = vmatprep.subr.bf16.mxu0 %v804
    %1102 = vmatpush1.bf16.msra.mxu0 %v803
    %1103 = vmatprep.subr.bf16.mxu0 %v797
    %1104 = vmatpush1.bf16.msra.mxu0 %v796
    %1105 = vmatprep.subr.bf16.mxu0 %v790
    %1106 = vmatpush1.bf16.msra.mxu0 %v789
    %1107 = vmatprep.subr.bf16.mxu0 %v895
    %1108 = vmatpush2.bf16.msra.mxu0 %v894
    %1109 = vmatprep.subr.bf16.mxu0 %v888
    %1110 = vmatpush2.bf16.msra.mxu0 %v887
    %1111 = vmatprep.subr.bf16.mxu0 %v881
    %1112 = vmatpush2.bf16.msra.mxu0 %v880
    %1113 = vmatprep.subr.bf16.mxu0 %v874
    %1114 = vmatpush2.bf16.msra.mxu0 %v873
    %1115 = vmatprep.subr.bf16.mxu0 %v867
    %1116 = vmatpush2.bf16.msra.mxu0 %v866
    %1117 = vmatprep.subr.bf16.mxu0 %v860
    %1118 = vmatpush2.bf16.msra.mxu0 %v859
    %1119 = vmatprep.subr.bf16.mxu0 %v853
    %1120 = vmatpush2.bf16.msra.mxu0 %v852
    %1121 = vmatprep.subr.bf16.mxu0 %v846
    %1122 = vmatpush2.bf16.msra.mxu0 %v845
    %1123 = vmatprep.mubr.bf16.mxu0 %v267
    %1124 = vmatmul.mubr.bf16.gmra.mxu0 %v266
    %v1125 = vpop.f32.mrf.mxu0
    %v1126 = vadd.f32 %v417, %v1125
    %v1127 = vpop.f32.mrf.mxu0
    %v1128 = vadd.f32 %v421, %v1127
    %v1129 = vpop.f32.mrf.mxu0
    %v1130 = vpop.f32.mrf.mxu0
    %1131 = vdwg.mxu0
    %1132 = vmatprep.subr.bf16.mxu0 0
    %1133 = vmatpush1.bf16.msra.mxu0 %v840
    %1134 = vmatprep.subr.bf16.mxu0 0
    %1135 = vmatpush1.bf16.msra.mxu0 %v833
    %1136 = vmatprep.subr.bf16.mxu0 0
    %1137 = vmatpush1.bf16.msra.mxu0 %v826
    %1138 = vmatprep.subr.bf16.mxu0 0
    %1139 = vmatpush1.bf16.msra.mxu0 %v819
    %1140 = vmatprep.subr.bf16.mxu0 0
    %1141 = vmatpush1.bf16.msra.mxu0 %v812
    %1142 = vmatprep.subr.bf16.mxu0 0
    %1143 = vmatpush1.bf16.msra.mxu0 %v805
    %1144 = vmatprep.subr.bf16.mxu0 0
    %1145 = vmatpush1.bf16.msra.mxu0 %v798
    %1146 = vmatprep.subr.bf16.mxu0 0
    %1147 = vmatpush1.bf16.msra.mxu0 %v791
    %1148 = vmatprep.subr.bf16.mxu0 0
    %1149 = vmatpush2.bf16.msra.mxu0 %v896
    %1150 = vmatprep.subr.bf16.mxu0 0
    %1151 = vmatpush2.bf16.msra.mxu0 %v889
    %1152 = vmatprep.subr.bf16.mxu0 0
    %1153 = vmatpush2.bf16.msra.mxu0 %v882
    %1154 = vmatprep.subr.bf16.mxu0 0
    %1155 = vmatpush2.bf16.msra.mxu0 %v875
    %1156 = vmatprep.subr.bf16.mxu0 0
    %1157 = vmatpush2.bf16.msra.mxu0 %v868
    %1158 = vmatprep.subr.bf16.mxu0 0
    %1159 = vmatpush2.bf16.msra.mxu0 %v861
    %1160 = vmatprep.subr.bf16.mxu0 0
    %1161 = vmatpush2.bf16.msra.mxu0 %v854
    %1162 = vmatprep.subr.bf16.mxu0 0
    %1163 = vmatpush2.bf16.msra.mxu0 %v847
    %1164 = vmatprep.mubr.bf16.mxu0 %v267
    %1165 = vmatmul.mubr.bf16.gmra.mxu0 %v266
    %v1166 = vpop.f32.mrf.mxu0
    %v1167 = vadd.f32 %v425, %v1166
    %v1168 = vpop.f32.mrf.mxu0
    %v1169 = vpop.f32.mrf.mxu0
    %v1170 = vpop.f32.mrf.mxu0
    %1171 = vdwg.mxu0
    %v1172 = vmax.f32 %v1044, 0.0
    %v1173 = vmax.f32 %v1046, 0.0
    %v1174 = vmax.f32 %v1085, 0.0
    %v1175 = vmax.f32 %v1087, 0.0
    %v1176 = vmax.f32 %v1126, 0.0
    %v1177 = vmax.f32 %v1128, 0.0
    %v1178 = vmax.f32 %v1167, 0.0
    %v1179 = vtanh.pop %v1172
    %v1180 = vtanh.pop %v1173
    %v1181 = vtanh.pop %v1174
    %v1182 = vtanh.pop %v1175
    %v1183 = vtanh.pop %v1176
    %v1184 = vtanh.pop %v1177
    %v1185 = vtanh.pop %v1178
    %1186 = vst [vmem:[#allocation2] sm:$0xff] %v1179
    %1187 = vst [vmem:[#allocation2 + $0x8] sm:$0xff] %v1180
    %1188 = vst [vmem:[#allocation2 + $0x10] sm:$0xff] %v1181
    %1189 = vst [vmem:[#allocation2 + $0x18] sm:$0xff] %v1182
    %1190 = vst [vmem:[#allocation2 + $0x20] sm:$0xff] %v1183
    %1191 = vst [vmem:[#allocation2 + $0x28] sm:$0xff] %v1184
    %vm1192 = vcmask 130048
    %1193 = vst.msk [vmem:[#allocation2 + $0x30] sm:$0xff] %vm1192, %v1185
    // Predicated region
    $region30: #{tpu_custom_call.1} parent=1 // pred_check
      _
    $region31: #{tpu_custom_call.1} parent=1 // pred_check_branch
      %1195 = sbr.rel (0) target = $region33
    $region32: #{tpu_custom_call.1} parent=1 // pred_region
      %s1197 = ssub.s32 896, 896
      %1198 = vsyncadd [#allocation3], %s1197
      %s1200 = sshll.u32 [#allocation2], 4
      %s1201 = int_to_ptr.vmem [resolvable:$true] %s1200
      %1203 = dma.vmem_to_hbm [thread:$0]  %s1201, 896, %s7, [#allocation3]
    $region33: #{tpu_custom_call.1} parent=1 // pred_fallthru
      _
    // Predicated region
    $region34: #{tpu_custom_call.1} parent=1 // pred_check
      _
    $region35: #{tpu_custom_call.1} parent=1 // pred_check_branch
      %1205 = sbr.rel (0) target = $region37
    $region36: #{tpu_custom_call.1} parent=1 // pred_region
      %1206 = dma.done [#allocation3], 896
    $region37: #{tpu_custom_call.1} parent=1 // pred_fallthru
      _
    %1207 = vsyncpa [#allocation3], 1

</llo_original>
